<compile_context>
chip_gen: v6e
topology: v6e:2x2x1
jax: 0.10.0
libtpu: 0.0.40
codegen_flags: <defaults>
</compile_context>

<pallas_src>
import functools

import jax
import jax.numpy as jnp
from jax.experimental import pallas as pl
from jax.experimental.pallas import tpu as pltpu

# Below this contraction size, layer 1 is done as VPU broadcast-FMAs.
_FMA_MAX_K = 8


def _round_up(x, m):
    return ((x + m - 1) // m) * m


def _policy_kernel(state_ref, w1_ref, b1_ref, w2_ref, b2_ref, wo_ref, bo_ref,
                   probs_ref):
    # Whole MLP per batch tile. Matmul operands for layers 2/3 are cast to the
    # stored weight dtype (f32 or bf16); accumulation and all elementwise math
    # stay in f32.
    cdt = w2_ref.dtype
    d_in = w1_ref.shape[0]
    x = state_ref[...]                                              # [TB, D_in]

    # ---- linear1 + tanh ----------------------------------------------------
    if d_in <= _FMA_MAX_K:
        # K is tiny (e.g. 4): an MXU pass would use only d_in of 128/256
        # contraction rows and force a W1<->W2 stationary-weight swap every
        # tile.  Do it as d_in VPU broadcast-FMAs instead.
        xf = x.astype(jnp.float32)
        w1f = w1_ref[...].astype(jnp.float32)
        pre1 = b1_ref[...]                                          # (1, H) f32
        for k in range(d_in):
            pre1 = pre1 + xf[:, k:k + 1] * w1f[k:k + 1, :]          # [TB, H]
        h1 = jnp.tanh(pre1)
    else:
        pre1 = jnp.dot(x.astype(cdt), w1_ref[...].astype(cdt),
                       preferred_element_type=jnp.float32)
        h1 = jnp.tanh(pre1 + b1_ref[...])                           # [TB, H] f32

    # ---- linear2 + tanh (MXU) ----------------------------------------------
    h2 = jnp.dot(h1.astype(cdt), w2_ref[...],
                 preferred_element_type=jnp.float32)
    h2 = jnp.tanh(h2 + b2_ref[...])                                 # [TB, H] f32

    # ---- output + softmax over the lane-padded logits -----------------------
    # Padded action columns carry bias -1e30 -> exp() == 0, so they do not
    # perturb the row max or the sum.
    logits = jnp.dot(h2.astype(cdt), wo_ref[...],
                     preferred_element_type=jnp.float32)
    logits = logits + bo_ref[...]                                   # [TB, A_pad]
    m = jnp.max(logits, axis=-1, keepdims=True)
    e = jnp.exp(logits - m)
    denom = jnp.sum(e, axis=-1, keepdims=True)
    probs = e * pl.reciprocal(denom, approx=True)

    # Store only the real action columns (lane-masked vst; HBM bytes shrink
    # ~A_pad/num_actions-fold vs. writing the padded tile).
    na = probs_ref.shape[-1]
    probs_ref[...] = probs[:, :na].astype(probs_ref.dtype)


def prepare_params(w1, b1, w2, b2, wo, bo, *, mxu_dtype=jnp.float32):
    """One-time parameter prep (hoisted out of the per-call forward path).

    PyTorch nn.Linear weights are (out, in); we store them transposed to
    (in, out) so the kernel does plain row-major matmuls, pad the output
    projection to 128 lanes so the softmax reductions run over full vregs
    (padded columns get a -1e30 bias), and (optionally) cast the MXU operands
    (layers 2/3) to bf16 while keeping biases in f32.  W1 stays f32 whenever
    the layer-1 VPU-FMA path is taken (d_in <= _FMA_MAX_K).
    """
    num_inputs = w1.shape[1]
    num_actions = wo.shape[0]
    a_pad = _round_up(max(num_actions, 128), 128)

    w1_dtype = jnp.float32 if num_inputs <= _FMA_MAX_K else mxu_dtype
    w1_t = w1.T.astype(w1_dtype)                                    # (D_in, H)
    w2_t = w2.T.astype(mxu_dtype)                                   # (H, H)
    wo_t = jnp.zeros((wo.shape[1], a_pad), mxu_dtype)
    wo_t = wo_t.at[:, :num_actions].set(wo.T.astype(mxu_dtype))     # (H, A_pad)

    b1_r = b1.reshape(1, -1).astype(jnp.float32)                    # (1, H)
    b2_r = b2.reshape(1, -1).astype(jnp.float32)                    # (1, H)
    bo_r = jnp.full((1, a_pad), -1e30, jnp.float32)
    bo_r = bo_r.at[:, :num_actions].set(bo.astype(jnp.float32))     # (1, A_pad)

    return (w1_t, b1_r, w2_t, b2_r, wo_t, bo_r), num_actions


@functools.partial(jax.jit, static_argnames=("num_actions", "batch_tile"))
def policy_forward(state, prepped, num_actions, batch_tile=2048):
    """state: [B, num_inputs] f32; prepped: output of prepare_params."""
    w1_t, b1_r, w2_t, b2_r, wo_t, bo_r = prepped
    B, d_in = state.shape

    # Batch tile: multiple of the f32 sublane (8).  At tb=2048 the per-step
    # blocks are ~32 KB of state + ~48 KB of probs (double-buffered) plus
    # ~20 KB of resident weights -- far under the scoped-VMEM default on every
    # generation (incl. v7x's 32 MiB / 64 MiB physical), while amortizing the
    # ~0.35 us/grid-step overhead.  If batch_tile is ever pushed past ~8K rows,
    # set vmem_limit_bytes explicitly and re-check against v7x's 64 MiB.
    tb = min(batch_tile, _round_up(B, 8))
    if B > 8:
        # v7x has 2 TensorCores: guarantee >= 2 grid steps when the batch
        # permits so the "parallel" axis can shard across cores (no-op on
        # single-TC v5e/v6e).
        half = _round_up((B + 1) // 2, 8)
        tb = min(tb, half)
    tb = max(tb, 8)
    grid = (pl.cdiv(B, tb),)

    # Weights/biases: constant block index -> DMA'd once, VMEM-resident.
    resident = lambda arr: pl.BlockSpec(arr.shape, lambda i: (0, 0))

    probs = pl.pallas_call(
        _policy_kernel,
        out_shape=jax.ShapeDtypeStruct((B, num_actions), jnp.float32),
        grid=grid,
        in_specs=[
            pl.BlockSpec((tb, d_in), lambda i: (i, 0)),   # state (pipelined)
            resident(w1_t), resident(b1_r),
            resident(w2_t), resident(b2_r),
            resident(wo_t), resident(bo_r),
        ],
        # Last block dim equals the full array dim (num_actions), so this is
        # legal; stores are lane-masked but HBM traffic drops ~21x vs. padding.
        out_specs=pl.BlockSpec((tb, num_actions), lambda i: (i, 0)),
        compiler_params=pltpu.CompilerParams(
            dimension_semantics=("parallel",)),            # v7x: 2 TCs
    )(state, w1_t, b1_r, w2_t, b2_r, wo_t, bo_r)

    return probs


def init_params(key, num_inputs, num_actions, hidden_size):
    """Deterministic PyTorch-default-style init (uniform +/- 1/sqrt(fan_in))."""
    ks = jax.random.split(key, 6)

    def lin(kw, kb, fan_in, fan_out):
        bound = 1.0 / jnp.sqrt(jnp.float32(fan_in))
        w = jax.random.uniform(kw, (fan_out, fan_in), jnp.float32, -bound, bound)
        b = jax.random.uniform(kb, (fan_out,), jnp.float32, -bound, bound)
        return w, b

    w1, b1 = lin(ks[0], ks[1], num_inputs, hidden_size)
    w2, b2 = lin(ks[2], ks[3], hidden_size, hidden_size)
    wo, bo = lin(ks[4], ks[5], hidden_size, num_actions)
    return w1, b1, w2, b2, wo, bo


def reference_forward(state, w1, b1, w2, b2, wo, bo):
    x = jnp.tanh(state @ w1.T + b1)
    x = jnp.tanh(x @ w2.T + b2)
    logits = x @ wo.T + bo
    return jax.nn.softmax(logits, axis=-1)


if __name__ == "__main__":
    num_inputs, num_actions, hidden_size = 4, 6, 32
    batch = 2

    key = jax.random.PRNGKey(0)
    k_state, k_params, k_big = jax.random.split(key, 3)
    state = jax.random.normal(k_state, (batch, num_inputs), jnp.float32)
    params = init_params(k_params, num_inputs, num_actions, hidden_size)

    # ---- f32 path, small batch (single partial tile) ------------------------
    prepped_f32, n_act = prepare_params(*params)               # one-time prep
    probs = policy_forward(state, prepped_f32, n_act)
    probs = jax.block_until_ready(probs)

    ref = reference_forward(state, *params)
    assert probs.shape == (batch, num_actions)
    assert jnp.allclose(probs, ref, atol=3e-3, rtol=3e-3), "f32 mismatch vs reference"
    assert jnp.allclose(jnp.sum(probs, axis=-1), 1.0, atol=1e-2)

    # ---- default tiling on a larger batch (>=2 grid steps on v7x) -----------
    big_state = jax.random.normal(k_big, (32, num_inputs), jnp.float32)
    ref_big = reference_forward(big_state, *params)

    probs_big = policy_forward(big_state, prepped_f32, n_act)
    probs_big = jax.block_until_ready(probs_big)
    assert probs_big.shape == (32, num_actions)
    assert jnp.allclose(probs_big, ref_big, atol=3e-3, rtol=3e-3), "default-tile mismatch"

    # ---- explicit small tile: multi-step pipelined grid ----------------------
    probs_tiled = policy_forward(big_state, prepped_f32, n_act, batch_tile=8)
    probs_tiled = jax.block_until_ready(probs_tiled)
    assert jnp.allclose(probs_tiled, ref_big, atol=3e-3, rtol=3e-3), "tiled mismatch"

    # ---- bf16 MXU path for layers 2/3 (v6e/v7x fast path) --------------------
    prepped_bf16, _ = prepare_params(*params, mxu_dtype=jnp.bfloat16)
    probs_bf16 = policy_forward(big_state, prepped_bf16, n_act)
    probs_bf16 = jax.block_until_ready(probs_bf16)
    assert jnp.allclose(probs_bf16, ref_big, atol=3e-2), "bf16 mismatch vs reference"

    print("KERNEL_OK")
</pallas_src>

<mosaic_0001>
module attributes {stable_mosaic.version = 11 : i64} {
  func.func @_policy_kernel(%arg0: i32, %arg1: memref<8x4xf32, #tpu.memory_space<vmem>>, %arg2: memref<4x32xf32, #tpu.memory_space<vmem>>, %arg3: memref<1x32xf32, #tpu.memory_space<vmem>>, %arg4: memref<32x32xf32, #tpu.memory_space<vmem>>, %arg5: memref<1x32xf32, #tpu.memory_space<vmem>>, %arg6: memref<32x128xf32, #tpu.memory_space<vmem>>, %arg7: memref<1x128xf32, #tpu.memory_space<vmem>>, %arg8: memref<8x6xf32, #tpu.memory_space<vmem>>) attributes {dimension_semantics = [#tpu.dimension_semantics<parallel>], iteration_bounds = array<i64: 1>, scalar_prefetch = 0 : i64, scratch_operands = 0 : i64, tpu.core_type = #tpu.core_type<tc>, window_params = [{transform_indices = @transform_0, window_bounds = array<i64: 8, 4>}, {pipeline_mode = #tpu.pipeline_mode<synchronous>, transform_indices = @transform_1, window_bounds = array<i64: 4, 32>}, {pipeline_mode = #tpu.pipeline_mode<synchronous>, transform_indices = @transform_2, window_bounds = array<i64: 1, 32>}, {pipeline_mode = #tpu.pipeline_mode<synchronous>, transform_indices = @transform_3, window_bounds = array<i64: 32, 32>}, {pipeline_mode = #tpu.pipeline_mode<synchronous>, transform_indices = @transform_4, window_bounds = array<i64: 1, 32>}, {pipeline_mode = #tpu.pipeline_mode<synchronous>, transform_indices = @transform_5, window_bounds = array<i64: 32, 128>}, {pipeline_mode = #tpu.pipeline_mode<synchronous>, transform_indices = @transform_6, window_bounds = array<i64: 1, 128>}, {transform_indices = @transform_7, window_bounds = array<i64: 8, 6>}]} {
    %c0 = arith.constant 0 : index
    %c0_0 = arith.constant 0 : index
    %0 = vector.load %arg1[%c0, %c0_0] : memref<8x4xf32, #tpu.memory_space<vmem>>, vector<8x4xf32>
    %c0_1 = arith.constant 0 : index
    %c0_2 = arith.constant 0 : index
    %1 = vector.load %arg2[%c0_1, %c0_2] : memref<4x32xf32, #tpu.memory_space<vmem>>, vector<4x32xf32>
    %c0_3 = arith.constant 0 : index
    %c0_4 = arith.constant 0 : index
    %2 = vector.load %arg3[%c0_3, %c0_4] : memref<1x32xf32, #tpu.memory_space<vmem>>, vector<1x32xf32>
    %3 = vector.extract_strided_slice %0 {offsets = [0, 0], sizes = [8, 1], strides = [1, 1]} : vector<8x4xf32> to vector<8x1xf32>
    %4 = vector.extract_strided_slice %1 {offsets = [0, 0], sizes = [1, 32], strides = [1, 1]} : vector<4x32xf32> to vector<1x32xf32>
    %5 = vector.broadcast %3 : vector<8x1xf32> to vector<8x32xf32>
    %6 = vector.broadcast %4 : vector<1x32xf32> to vector<8x32xf32>
    %7 = arith.mulf %5, %6 : vector<8x32xf32>
    %8 = vector.broadcast %2 : vector<1x32xf32> to vector<8x32xf32>
    %9 = arith.addf %8, %7 : vector<8x32xf32>
    %10 = vector.extract_strided_slice %0 {offsets = [0, 1], sizes = [8, 1], strides = [1, 1]} : vector<8x4xf32> to vector<8x1xf32>
    %11 = vector.extract_strided_slice %1 {offsets = [1, 0], sizes = [1, 32], strides = [1, 1]} : vector<4x32xf32> to vector<1x32xf32>
    %12 = vector.broadcast %10 : vector<8x1xf32> to vector<8x32xf32>
    %13 = vector.broadcast %11 : vector<1x32xf32> to vector<8x32xf32>
    %14 = arith.mulf %12, %13 : vector<8x32xf32>
    %15 = arith.addf %9, %14 : vector<8x32xf32>
    %16 = vector.extract_strided_slice %0 {offsets = [0, 2], sizes = [8, 1], strides = [1, 1]} : vector<8x4xf32> to vector<8x1xf32>
    %17 = vector.extract_strided_slice %1 {offsets = [2, 0], sizes = [1, 32], strides = [1, 1]} : vector<4x32xf32> to vector<1x32xf32>
    %18 = vector.broadcast %16 : vector<8x1xf32> to vector<8x32xf32>
    %19 = vector.broadcast %17 : vector<1x32xf32> to vector<8x32xf32>
    %20 = arith.mulf %18, %19 : vector<8x32xf32>
    %21 = arith.addf %15, %20 : vector<8x32xf32>
    %22 = vector.extract_strided_slice %0 {offsets = [0, 3], sizes = [8, 1], strides = [1, 1]} : vector<8x4xf32> to vector<8x1xf32>
    %23 = vector.extract_strided_slice %1 {offsets = [3, 0], sizes = [1, 32], strides = [1, 1]} : vector<4x32xf32> to vector<1x32xf32>
    %24 = vector.broadcast %22 : vector<8x1xf32> to vector<8x32xf32>
    %25 = vector.broadcast %23 : vector<1x32xf32> to vector<8x32xf32>
    %26 = arith.mulf %24, %25 : vector<8x32xf32>
    %27 = arith.addf %21, %26 : vector<8x32xf32>
    %28 = math.tanh %27 : vector<8x32xf32>
    %c0_5 = arith.constant 0 : index
    %c0_6 = arith.constant 0 : index
    %29 = vector.load %arg4[%c0_5, %c0_6] : memref<32x32xf32, #tpu.memory_space<vmem>>, vector<32x32xf32>
    %cst = arith.constant dense<0.000000e+00> : vector<8x32xf32>
    %30 = tpu.matmul %28, %29, %cst {dimension_numbers = #tpu.dot_dimension_numbers<[1], [0], [0], [1], [0, 0, 1, 1], [], []>} : vector<8x32xf32>, vector<32x32xf32>, vector<8x32xf32> -> vector<8x32xf32>
    %c0_7 = arith.constant 0 : index
    %c0_8 = arith.constant 0 : index
    %31 = vector.load %arg5[%c0_7, %c0_8] : memref<1x32xf32, #tpu.memory_space<vmem>>, vector<1x32xf32>
    %32 = vector.broadcast %31 : vector<1x32xf32> to vector<8x32xf32>
    %33 = arith.addf %30, %32 : vector<8x32xf32>
    %34 = math.tanh %33 : vector<8x32xf32>
    %c0_9 = arith.constant 0 : index
    %c0_10 = arith.constant 0 : index
    %35 = vector.load %arg6[%c0_9, %c0_10] : memref<32x128xf32, #tpu.memory_space<vmem>>, vector<32x128xf32>
    %cst_11 = arith.constant dense<0.000000e+00> : vector<8x128xf32>
    %36 = tpu.matmul %34, %35, %cst_11 {dimension_numbers = #tpu.dot_dimension_numbers<[1], [0], [0], [1], [0, 0, 1, 1], [], []>} : vector<8x32xf32>, vector<32x128xf32>, vector<8x128xf32> -> vector<8x128xf32>
    %c0_12 = arith.constant 0 : index
    %c0_13 = arith.constant 0 : index
    %37 = vector.load %arg7[%c0_12, %c0_13] : memref<1x128xf32, #tpu.memory_space<vmem>>, vector<1x128xf32>
    %38 = vector.broadcast %37 : vector<1x128xf32> to vector<8x128xf32>
    %39 = arith.addf %36, %38 : vector<8x128xf32>
    %cst_14 = arith.constant dense<0xFF800000> : vector<8xf32>
    %40 = vector.multi_reduction <maximumf>, %39, %cst_14 [1] : vector<8x128xf32> to vector<8xf32>
    %41 = vector.shape_cast %40 : vector<8xf32> to vector<8x1xf32>
    %42 = vector.broadcast %41 : vector<8x1xf32> to vector<8x128xf32>
    %43 = arith.subf %39, %42 : vector<8x128xf32>
    %44 = math.exp %43 : vector<8x128xf32>
    %cst_15 = arith.constant dense<0.000000e+00> : vector<8xf32>
    %45 = vector.multi_reduction <add>, %44, %cst_15 [1] : vector<8x128xf32> to vector<8xf32>
    %46 = vector.shape_cast %45 : vector<8xf32> to vector<8x1xf32>
    %47 = tpu.reciprocal %46 {approx = true} : vector<8x1xf32> -> vector<8x1xf32>
    %48 = vector.broadcast %47 : vector<8x1xf32> to vector<8x128xf32>
    %49 = arith.mulf %44, %48 : vector<8x128xf32>
    %50 = vector.extract_strided_slice %49 {offsets = [0, 0], sizes = [8, 6], strides = [1, 1]} : vector<8x128xf32> to vector<8x6xf32>
    %c0_16 = arith.constant 0 : index
    %c0_17 = arith.constant 0 : index
    %51 = vector.load %arg8[%c0_16, %c0_17] : memref<8x6xf32, #tpu.memory_space<vmem>>, vector<8x6xf32>
    tpu.vector_store %arg8[%c0_16, %c0_17], %50 {strides = array<i32>} : memref<8x6xf32, #tpu.memory_space<vmem>>, vector<8x6xf32>,
    return
  }
  func.func @transform_0(%arg0: i32) -> (i32, i32) {
    %c0_i32 = arith.constant 0 : i32
    %c0_i32_0 = arith.constant 0 : i32
    return %arg0, %c0_i32 : i32, i32
  }
  func.func @transform_1(%arg0: i32) -> (i32, i32) {
    %c0_i32 = arith.constant 0 : i32
    %c0_i32_0 = arith.constant 0 : i32
    %c0_i32_1 = arith.constant 0 : i32
    return %c0_i32, %c0_i32_0 : i32, i32
  }
  func.func @transform_2(%arg0: i32) -> (i32, i32) {
    %c0_i32 = arith.constant 0 : i32
    %c0_i32_0 = arith.constant 0 : i32
    %c0_i32_1 = arith.constant 0 : i32
    return %c0_i32, %c0_i32_0 : i32, i32
  }
  func.func @transform_3(%arg0: i32) -> (i32, i32) {
    %c0_i32 = arith.constant 0 : i32
    %c0_i32_0 = arith.constant 0 : i32
    %c0_i32_1 = arith.constant 0 : i32
    return %c0_i32, %c0_i32_0 : i32, i32
  }
  func.func @transform_4(%arg0: i32) -> (i32, i32) {
    %c0_i32 = arith.constant 0 : i32
    %c0_i32_0 = arith.constant 0 : i32
    %c0_i32_1 = arith.constant 0 : i32
    return %c0_i32, %c0_i32_0 : i32, i32
  }
  func.func @transform_5(%arg0: i32) -> (i32, i32) {
    %c0_i32 = arith.constant 0 : i32
    %c0_i32_0 = arith.constant 0 : i32
    %c0_i32_1 = arith.constant 0 : i32
    return %c0_i32, %c0_i32_0 : i32, i32
  }
  func.func @transform_6(%arg0: i32) -> (i32, i32) {
    %c0_i32 = arith.constant 0 : i32
    %c0_i32_0 = arith.constant 0 : i32
    %c0_i32_1 = arith.constant 0 : i32
    return %c0_i32, %c0_i32_0 : i32, i32
  }
  func.func @transform_7(%arg0: i32) -> (i32, i32) {
    %c0_i32 = arith.constant 0 : i32
    %c0_i32_0 = arith.constant 0 : i32
    return %arg0, %c0_i32 : i32, i32
  }
}

</mosaic_0001>

<llo_original>
// kernel: policy_forward.1
$region0: #{policy_forward.1}
  #allocation0 [shape = 'u32[]', space=smem, size = 0x4, offset = 0x4, fixed_abs, tag = 'smem constant byte address 0x4 - core index']
  #allocation1 [shape = 'u32[144,128]{1,0:T(1,128)}', space=vmem, size = 0x12000, scoped, tag = 'internal scratch']
  %s0 = inlined_call_operand.hbm [shape: f32[2,4], index: 0, kind: input, shape index: {}]
  %s1 = inlined_call_operand.hbm [shape: f32[4,32], index: 1, kind: input, shape index: {}]
  %s2 = inlined_call_operand.vmem [shape: f32[1,32], index: 2, kind: input, shape index: {}]
  %s3 = inlined_call_operand.hbm [shape: f32[32,32], index: 3, kind: input, shape index: {}]
  %s4 = inlined_call_operand.vmem [shape: f32[1,32], index: 4, kind: input, shape index: {}]
  %s5 = inlined_call_operand.hbm [shape: f32[32,128], index: 5, kind: input, shape index: {}]
  %s6 = inlined_call_operand.vmem [shape: f32[1,128], index: 6, kind: input, shape index: {}]
  %s7 = inlined_call_operand.hbm [shape: f32[2,6], index: 7, kind: output, shape index: {}]
  %s8 = sld [smem:[#allocation0]]
  $region54: #{policy_forward.1} parent=0
    _
  %s10 = ssub.s32 1, %s8
  %s11 = scalar_select 0, %s10, %s8
  $region1: #{policy_forward.1} parent=0
    #allocation2 [shape = 'u8[4096]{0}', space=vmem, size = 0x1000, scoped, tag = 'input window, operand 0, single buffered']
    #allocation3 [shape = 's32[1]{0}', space=sflag, size = 0x4, scoped, tag = 'scoped memory for policy_forward.1']
    #allocation4 [shape = 's32[1]{0}', space=sflag, size = 0x4, scoped, tag = 'scoped memory for policy_forward.1']
    #allocation5 [shape = 'u8[2048]{0}', space=vmem, size = 0x800, scoped, tag = 'input window, operand 1, single buffered']
    #allocation6 [shape = 's32[1]{0}', space=sflag, size = 0x4, scoped, tag = 'scoped memory for policy_forward.1']
    #allocation7 [shape = 'u8[16384]{0}', space=vmem, size = 0x4000, scoped, tag = 'input window, operand 3, single buffered']
    #allocation8 [shape = 'u8[16384]{0}', space=vmem, size = 0x4000, scoped, tag = 'input window, operand 5, single buffered']
    #allocation9 [shape = 's32[1]{0}', space=sflag, size = 0x4, scoped, tag = 'scoped memory for policy_forward.1']
    #allocation10 [shape = 'u8[4096]{0}', space=vmem, size = 0x1000, scoped, tag = 'output window, operand 0, single buffered']
    %12 = vsyncpa [#allocation3], 0
    %13 = vsyncpa [#allocation6], 0
    %14 = vsyncpa [#allocation9], 0
    %15 = vsyncpa [#allocation4], 0
    // Predicated region
    $region2: #{policy_forward.1} parent=1 // pred_check
      _
    $region3: #{policy_forward.1} parent=1 // pred_check_branch
      %17 = sbr.rel (0) target = $region5
    $region4: #{policy_forward.1} parent=1 // pred_region
      %s19 = ssub.s32 128, 32
      %20 = vsyncadd [#allocation3], %s19
      %s21 = sshll.u32 [#allocation2], 4
      %s22 = int_to_ptr.vmem [resolvable:$true] %s21
      %27 = dma.hbm_to_vmem [thread:$0]  %s0, 32, %s22, [#allocation3], 32, 32, 2
    $region5: #{policy_forward.1} parent=1 // pred_fallthru
      _
    // Predicated region
    $region6: #{policy_forward.1} parent=1 // pred_check
      _
    $region7: #{policy_forward.1} parent=1 // pred_check_branch
      %29 = sbr.rel (0) target = $region9
    $region8: #{policy_forward.1} parent=1 // pred_region
      %s31 = ssub.s32 64, 64
      %32 = vsyncadd [#allocation6], %s31
      %s34 = sshll.u32 [#allocation5], 4
      %s35 = int_to_ptr.vmem [resolvable:$true] %s34
      %37 = dma.hbm_to_vmem [thread:$0]  %s1, 64, %s35, [#allocation6]
    $region9: #{policy_forward.1} parent=1 // pred_fallthru
      _
    // Predicated region
    $region10: #{policy_forward.1} parent=1 // pred_check
      _
    $region11: #{policy_forward.1} parent=1 // pred_check_branch
      %39 = sbr.rel (0) target = $region13
    $region12: #{policy_forward.1} parent=1 // pred_region
      _
    $region13: #{policy_forward.1} parent=1 // pred_fallthru
      _
    // Predicated region
    $region14: #{policy_forward.1} parent=1 // pred_check
      _
    $region15: #{policy_forward.1} parent=1 // pred_check_branch
      %41 = sbr.rel (0) target = $region17
    $region16: #{policy_forward.1} parent=1 // pred_region
      %s43 = ssub.s32 512, 512
      %44 = vsyncadd [#allocation6], %s43
      %s45 = sshll.u32 [#allocation7], 4
      %s46 = int_to_ptr.vmem [resolvable:$true] %s45
      %51 = dma.hbm_to_vmem [thread:$0]  %s3, 512, %s46, [#allocation6], 128, 128, 8
    $region17: #{policy_forward.1} parent=1 // pred_fallthru
      _
    // Predicated region
    $region18: #{policy_forward.1} parent=1 // pred_check
      _
    $region19: #{policy_forward.1} parent=1 // pred_check_branch
      %53 = sbr.rel (0) target = $region21
    $region20: #{policy_forward.1} parent=1 // pred_region
      _
    $region21: #{policy_forward.1} parent=1 // pred_fallthru
      _
    // Predicated region
    $region22: #{policy_forward.1} parent=1 // pred_check
      _
    $region23: #{policy_forward.1} parent=1 // pred_check_branch
      %55 = sbr.rel (0) target = $region25
    $region24: #{policy_forward.1} parent=1 // pred_region
      %s57 = ssub.s32 512, 512
      %58 = vsyncadd [#allocation9], %s57
      %s59 = sshll.u32 [#allocation8], 4
      %s60 = int_to_ptr.vmem [resolvable:$true] %s59
      %65 = dma.hbm_to_vmem [thread:$0]  %s5, 512, %s60, [#allocation9], 128, 128, 8
    $region25: #{policy_forward.1} parent=1 // pred_fallthru
      _
    // Predicated region
    $region26: #{policy_forward.1} parent=1 // pred_check
      _
    $region27: #{policy_forward.1} parent=1 // pred_check_branch
      %67 = sbr.rel (0) target = $region29
    $region28: #{policy_forward.1} parent=1 // pred_region
      _
    $region29: #{policy_forward.1} parent=1 // pred_fallthru
      _
    // Predicated region
    $region30: #{policy_forward.1} parent=1 // pred_check
      _
    $region31: #{policy_forward.1} parent=1 // pred_check_branch
      %69 = sbr.rel (0) target = $region33
    $region32: #{policy_forward.1} parent=1 // pred_region
      %70 = dma.done [#allocation3], 128
    $region33: #{policy_forward.1} parent=1 // pred_fallthru
      _
    // Predicated region
    $region34: #{policy_forward.1} parent=1 // pred_check
      _
    $region35: #{policy_forward.1} parent=1 // pred_check_branch
      %72 = sbr.rel (0) target = $region37
    $region36: #{policy_forward.1} parent=1 // pred_region
      %73 = dma.done [#allocation6], 64
    $region37: #{policy_forward.1} parent=1 // pred_fallthru
      _
    // Predicated region
    $region38: #{policy_forward.1} parent=1 // pred_check
      _
    $region39: #{policy_forward.1} parent=1 // pred_check_branch
      %75 = sbr.rel (0) target = $region41
    $region40: #{policy_forward.1} parent=1 // pred_region
      %76 = dma.done [#allocation6], 512
    $region41: #{policy_forward.1} parent=1 // pred_fallthru
      _
    // Predicated region
    $region42: #{policy_forward.1} parent=1 // pred_check
      _
    $region43: #{policy_forward.1} parent=1 // pred_check_branch
      %78 = sbr.rel (0) target = $region45
    $region44: #{policy_forward.1} parent=1 // pred_region
      %79 = dma.done [#allocation9], 512
    $region45: #{policy_forward.1} parent=1 // pred_fallthru
      _
    %v80 = vld [vmem:[#allocation2] sm:$0xff]
    %v81 = vld [vmem:[#allocation5] sm:$0xf]
    %v82 = vld [vmem:[%s2] sm:$0x1]
    %84 = vset.pattern.permute.xlu0 0
    %85 = vperm.xlu0 %84, %v80
    %v86 = vpop.permute.xlu0 %85
    %v88 = vlaneseq
    %v89 = vshrl.u32 %v88, 7
    %v90 = vsub.s32 0, %v89
    %v91 = vrot.slane %v81, %v90
    %v92 = vmul.f32 %v86, %v91
    %v94 = vlaneseq
    %v95 = vshrl.u32 %v94, 7
    %v96 = vsub.s32 0, %v95
    %v97 = vrot.slane %v82, %v96
    %v99 = vadd.f32 %v97, %v92
    %100 = vset.pattern.permute.xlu0 1
    %101 = vperm.xlu0 %100, %v80
    %v102 = vpop.permute.xlu0 %101
    %v104 = vlaneseq
    %v105 = vshrl.u32 %v104, 7
    %v106 = vsub.s32 1, %v105
    %v107 = vrot.slane %v81, %v106
    %v108 = vmul.f32 %v102, %v107
    %v109 = vadd.f32 %v99, %v108
    %110 = vset.pattern.permute.xlu0 2
    %111 = vperm.xlu0 %110, %v80
    %v112 = vpop.permute.xlu0 %111
    %v114 = vlaneseq
    %v115 = vshrl.u32 %v114, 7
    %v116 = vsub.s32 2, %v115
    %v117 = vrot.slane %v81, %v116
    %v118 = vmul.f32 %v112, %v117
    %v119 = vadd.f32 %v109, %v118
    %120 = vset.pattern.permute.xlu0 3
    %121 = vperm.xlu0 %120, %v80
    %v122 = vpop.permute.xlu0 %121
    %v124 = vlaneseq
    %v125 = vshrl.u32 %v124, 7
    %v126 = vsub.s32 3, %v125
    %v127 = vrot.slane %v81, %v126
    %v128 = vmul.f32 %v122, %v127
    %v129 = vadd.f32 %v119, %v128
    %v130 = vtanh.pop %v129
    %v131 = vld [vmem:[#allocation7] sm:$0xff]
    %v132 = vld [vmem:[#allocation7 + $0x8] sm:$0xff]
    %v133 = vld [vmem:[#allocation7 + $0x10] sm:$0xff]
    %v134 = vld [vmem:[#allocation7 + $0x18] sm:$0xff]
    %v135 = vld [vmem:[%s4] sm:$0x1]
    %v137 = vlaneseq
    %v138 = vshrl.u32 %v137, 7
    %v139 = vsub.s32 0, %v138
    %v140 = vrot.slane %v135, %v139
    %vm142 = vcmask 261120
    %v144 = vsel %vm142, %v130, 0
    %146 = vmatprep.subr.mxu0 0.0
    %147 = vmatpush1.msra.mxu0 0.0
    %148 = vmatprep.subr.mxu0 0.0
    %149 = vmatpush1.msra.mxu0 0.0
    %150 = vmatprep.subr.mxu0 0.0
    %151 = vmatpush1.msra.mxu0 0.0
    %152 = vmatprep.subr.mxu0 0.0
    %153 = vmatpush1.msra.mxu0 0.0
    %154 = vmatprep.subr.mxu0 0.0
    %155 = vmatpush1.msra.mxu0 0.0
    %156 = vmatprep.subr.mxu0 0.0
    %157 = vmatpush1.msra.mxu0 0.0
    %158 = vmatprep.subr.mxu0 0.0
    %159 = vmatpush1.msra.mxu0 0.0
    %160 = vmatprep.subr.mxu0 0.0
    %161 = vmatpush1.msra.mxu0 0.0
    %162 = vmatprep.subr.mxu0 0.0
    %163 = vmatpush1.msra.mxu0 0.0
    %164 = vmatprep.subr.mxu0 0.0
    %165 = vmatpush1.msra.mxu0 0.0
    %166 = vmatprep.subr.mxu0 0.0
    %167 = vmatpush1.msra.mxu0 0.0
    %168 = vmatprep.subr.mxu0 0.0
    %169 = vmatpush1.msra.mxu0 0.0
    %170 = vmatprep.subr.mxu0 0.0
    %171 = vmatpush1.msra.mxu0 %v134
    %172 = vmatprep.subr.mxu0 0.0
    %173 = vmatpush1.msra.mxu0 %v133
    %174 = vmatprep.subr.mxu0 0.0
    %175 = vmatpush1.msra.mxu0 %v132
    %176 = vmatprep.subr.mxu0 0.0
    %177 = vmatpush1.msra.mxu0 %v131
    %178 = vmatprep.subr.mxu0 0.0
    %179 = vmatpush2.msra.mxu0 0.0
    %180 = vmatprep.subr.mxu0 0.0
    %181 = vmatpush2.msra.mxu0 0.0
    %182 = vmatprep.subr.mxu0 0.0
    %183 = vmatpush2.msra.mxu0 0.0
    %184 = vmatprep.subr.mxu0 0.0
    %185 = vmatpush2.msra.mxu0 0.0
    %186 = vmatprep.subr.mxu0 0.0
    %187 = vmatpush2.msra.mxu0 0.0
    %188 = vmatprep.subr.mxu0 0.0
    %189 = vmatpush2.msra.mxu0 0.0
    %190 = vmatprep.subr.mxu0 0.0
    %191 = vmatpush2.msra.mxu0 0.0
    %192 = vmatprep.subr.mxu0 0.0
    %193 = vmatpush2.msra.mxu0 0.0
    %194 = vmatprep.subr.mxu0 0.0
    %195 = vmatpush2.msra.mxu0 0.0
    %196 = vmatprep.subr.mxu0 0.0
    %197 = vmatpush2.msra.mxu0 0.0
    %198 = vmatprep.subr.mxu0 0.0
    %199 = vmatpush2.msra.mxu0 0.0
    %200 = vmatprep.subr.mxu0 0.0
    %201 = vmatpush2.msra.mxu0 0.0
    %202 = vmatprep.subr.mxu0 0.0
    %203 = vmatpush2.msra.mxu0 0.0
    %204 = vmatprep.subr.mxu0 0.0
    %205 = vmatpush2.msra.mxu0 0.0
    %206 = vmatprep.subr.mxu0 0.0
    %207 = vmatpush2.msra.mxu0 0.0
    %208 = vmatprep.subr.mxu0 0.0
    %209 = vmatpush2.msra.mxu0 0.0
    %210 = vmatprep.mubr.f32.mxu0 0.0
    %211 = vmatmul.mubr.f32.gmra.mxu0 %v144
    %v212 = vpop.f32.mrf.mxu0
    %v213 = vadd.f32 %v140, %v212
    %v214 = vpop.f32.mrf.mxu0
    %215 = vdwg.mxu0
    %v216 = vtanh.pop %v213
    %v217 = vld [vmem:[#allocation8] sm:$0xff]
    %v218 = vld [vmem:[#allocation8 + $0x8] sm:$0xff]
    %v219 = vld [vmem:[#allocation8 + $0x10] sm:$0xff]
    %v220 = vld [vmem:[#allocation8 + $0x18] sm:$0xff]
    %v221 = vld [vmem:[%s6] sm:$0x1]
    %v223 = vlaneseq
    %v224 = vshrl.u32 %v223, 7
    %v225 = vsub.s32 0, %v224
    %v226 = vrot.slane %v221, %v225
    %v229 = vsel %vm142, %v216, 0
    %231 = vmatprep.subr.mxu0 0.0
    %232 = vmatpush1.msra.mxu0 0.0
    %233 = vmatprep.subr.mxu0 0.0
    %234 = vmatpush1.msra.mxu0 0.0
    %235 = vmatprep.subr.mxu0 0.0
    %236 = vmatpush1.msra.mxu0 0.0
    %237 = vmatprep.subr.mxu0 0.0
    %238 = vmatpush1.msra.mxu0 0.0
    %239 = vmatprep.subr.mxu0 0.0
    %240 = vmatpush1.msra.mxu0 0.0
    %241 = vmatprep.subr.mxu0 0.0
    %242 = vmatpush1.msra.mxu0 0.0
    %243 = vmatprep.subr.mxu0 0.0
    %244 = vmatpush1.msra.mxu0 0.0
    %245 = vmatprep.subr.mxu0 0.0
    %246 = vmatpush1.msra.mxu0 0.0
    %247 = vmatprep.subr.mxu0 0.0
    %248 = vmatpush1.msra.mxu0 0.0
    %249 = vmatprep.subr.mxu0 0.0
    %250 = vmatpush1.msra.mxu0 0.0
    %251 = vmatprep.subr.mxu0 0.0
    %252 = vmatpush1.msra.mxu0 0.0
    %253 = vmatprep.subr.mxu0 0.0
    %254 = vmatpush1.msra.mxu0 0.0
    %255 = vmatprep.subr.mxu0 0.0
    %256 = vmatpush1.msra.mxu0 %v220
    %257 = vmatprep.subr.mxu0 0.0
    %258 = vmatpush1.msra.mxu0 %v219
    %259 = vmatprep.subr.mxu0 0.0
    %260 = vmatpush1.msra.mxu0 %v218
    %261 = vmatprep.subr.mxu0 0.0
    %262 = vmatpush1.msra.mxu0 %v217
    %263 = vmatprep.subr.mxu0 0.0
    %264 = vmatpush2.msra.mxu0 0.0
    %265 = vmatprep.subr.mxu0 0.0
    %266 = vmatpush2.msra.mxu0 0.0
    %267 = vmatprep.subr.mxu0 0.0
    %268 = vmatpush2.msra.mxu0 0.0
    %269 = vmatprep.subr.mxu0 0.0
    %270 = vmatpush2.msra.mxu0 0.0
    %271 = vmatprep.subr.mxu0 0.0
    %272 = vmatpush2.msra.mxu0 0.0
    %273 = vmatprep.subr.mxu0 0.0
    %274 = vmatpush2.msra.mxu0 0.0
    %275 = vmatprep.subr.mxu0 0.0
    %276 = vmatpush2.msra.mxu0 0.0
    %277 = vmatprep.subr.mxu0 0.0
    %278 = vmatpush2.msra.mxu0 0.0
    %279 = vmatprep.subr.mxu0 0.0
    %280 = vmatpush2.msra.mxu0 0.0
    %281 = vmatprep.subr.mxu0 0.0
    %282 = vmatpush2.msra.mxu0 0.0
    %283 = vmatprep.subr.mxu0 0.0
    %284 = vmatpush2.msra.mxu0 0.0
    %285 = vmatprep.subr.mxu0 0.0
    %286 = vmatpush2.msra.mxu0 0.0
    %287 = vmatprep.subr.mxu0 0.0
    %288 = vmatpush2.msra.mxu0 0.0
    %289 = vmatprep.subr.mxu0 0.0
    %290 = vmatpush2.msra.mxu0 0.0
    %291 = vmatprep.subr.mxu0 0.0
    %292 = vmatpush2.msra.mxu0 0.0
    %293 = vmatprep.subr.mxu0 0.0
    %294 = vmatpush2.msra.mxu0 0.0
    %295 = vmatprep.mubr.f32.mxu0 0.0
    %296 = vmatmul.mubr.f32.gmra.mxu0 %v229
    %v297 = vpop.f32.mrf.mxu0
    %v298 = vadd.f32 %v226, %v297
    %v299 = vpop.f32.mrf.mxu0
    %300 = vdwg.mxu0
    %301 = vmax.xlane.f32.xlu0 %v298
    %v302 = vpop.xlane.xlu0 %301
    %v303 = vsub.f32 %v298, %v302
    %v304 = vmul.f32 %v303, 1.442695
    %v305 = vpow.pop %v304
    %306 = vadd.xlane.f32.xlu0 %v305
    %v307 = vpop.xlane.xlu0 %306
    %v308 = vrcp.pop %v307
    %v309 = vmul.f32 %v305, %v308
    %vm310 = vcmask 48128
    %311 = vst.msk [vmem:[#allocation10] sm:$0xff] %vm310, %v309
    // Predicated region
    $region46: #{policy_forward.1} parent=1 // pred_check
      _
    $region47: #{policy_forward.1} parent=1 // pred_check_branch
      %313 = sbr.rel (0) target = $region49
    $region48: #{policy_forward.1} parent=1 // pred_region
      %s315 = ssub.s32 128, 32
      %316 = vsyncadd [#allocation4], %s315
      %s317 = sshll.u32 [#allocation10], 4
      %s318 = int_to_ptr.vmem [resolvable:$true] %s317
      %323 = dma.vmem_to_hbm [thread:$0]  %s318, 32, %s7, [#allocation4], 32, 32, 2
    $region49: #{policy_forward.1} parent=1 // pred_fallthru
      _
    // Predicated region
    $region50: #{policy_forward.1} parent=1 // pred_check
      _
    $region51: #{policy_forward.1} parent=1 // pred_check_branch
      %325 = sbr.rel (0) target = $region53
    $region52: #{policy_forward.1} parent=1 // pred_region
      %326 = dma.done [#allocation4], 128
    $region53: #{policy_forward.1} parent=1 // pred_fallthru
      _
    %327 = vsyncpa [#allocation3], 1
    %328 = vsyncpa [#allocation6], 1
    %329 = vsyncpa [#allocation9], 1
    %330 = vsyncpa [#allocation4], 1

</llo_original>
